<compile_context>
chip_gen: v5e
topology: v5e:2x2
jax: 0.10.0
libtpu: 0.0.40
codegen_flags: <defaults>
</compile_context>

<pallas_src>
import functools
import math

import jax
import jax.numpy as jnp
from jax.experimental import pallas as pl
from jax.experimental.pallas import tpu as pltpu


def sdpa_kernel(scale, q_ref, k_ref, v_ref, ctx_ref, attn_ref):
    q = q_ref[...]          # [TB, S, d_k]
    k = k_ref[...]          # [TB, S, d_k]
    v = v_ref[...]          # [TB, S, d_v]

    # scores = Q @ K^T / sqrt(d_k)   (batched over the TB tile)
    scores = jnp.einsum("bqd,bkd->bqk", q, k,
                        preferred_element_type=jnp.float32) * scale

    # Numerically stable softmax over the key axis (matches torch.nn.Softmax).
    m = jnp.max(scores, axis=-1, keepdims=True)
    e = jnp.exp(scores - m)
    denom = jnp.sum(e, axis=-1, keepdims=True)
    attn = e * pl.reciprocal(denom, approx=False)

    # dropout(attn) is identity in eval mode.

    # context = attn @ V
    ctx = jnp.einsum("bqk,bkd->bqd", attn.astype(v.dtype), v,
                     preferred_element_type=jnp.float32)

    attn_ref[...] = attn.astype(attn_ref.dtype)
    ctx_ref[...] = ctx.astype(ctx_ref.dtype)


def scaled_dot_product_attention(Q, K, V, *, block_b=None):
    """Pallas forward of ScaledDotProductAttention. Returns (context, attn)."""
    B, S, d_k = Q.shape
    d_v = V.shape[-1]
    assert K.shape == (B, S, d_k)
    assert V.shape[:2] == (B, S)

    if block_b is None:
        block_b = min(B, 8)
    assert B % block_b == 0, "batch must be divisible by the batch tile"
    grid = (B // block_b,)

    kernel = functools.partial(sdpa_kernel, 1.0 / math.sqrt(d_k))

    ctx, attn = pl.pallas_call(
        kernel,
        out_shape=(
            jax.ShapeDtypeStruct((B, S, d_v), jnp.float32),
            jax.ShapeDtypeStruct((B, S, S), jnp.float32),
        ),
        grid=grid,
        in_specs=[
            pl.BlockSpec((block_b, S, d_k), lambda i: (i, 0, 0)),
            pl.BlockSpec((block_b, S, d_k), lambda i: (i, 0, 0)),
            pl.BlockSpec((block_b, S, d_v), lambda i: (i, 0, 0)),
        ],
        out_specs=(
            pl.BlockSpec((block_b, S, d_v), lambda i: (i, 0, 0)),
            pl.BlockSpec((block_b, S, S), lambda i: (i, 0, 0)),
        ),
        compiler_params=pltpu.CompilerParams(
            dimension_semantics=("parallel",)),
    )(Q, K, V)
    return ctx, attn


if __name__ == "__main__":
    # Small shapes consistent with the module's docstring:
    #   Q/K: [batch_size, n_heads, d_k], V: [batch_size, n_heads, d_v]
    B, n_heads, d_k, d_v = 4, 8, 64, 32

    key = jax.random.PRNGKey(0)
    kq, kk, kv = jax.random.split(key, 3)
    Q = jax.random.normal(kq, (B, n_heads, d_k), jnp.float32)
    K = jax.random.normal(kk, (B, n_heads, d_k), jnp.float32)
    V = jax.random.normal(kv, (B, n_heads, d_v), jnp.float32)

    context, attn = scaled_dot_product_attention(Q, K, V, block_b=2)
    context, attn = jax.block_until_ready((context, attn))

    # Pure-JAX reference (same math as the torch module in eval mode).
    scores_ref = jnp.einsum("bqd,bkd->bqk", Q, K) / math.sqrt(d_k)
    attn_ref = jax.nn.softmax(scores_ref, axis=-1)
    context_ref = jnp.einsum("bqk,bkd->bqd", attn_ref, V)

    assert context.shape == (B, n_heads, d_v)
    assert attn.shape == (B, n_heads, n_heads)
    assert bool(jnp.all(jnp.isfinite(context)))
    assert bool(jnp.allclose(attn, attn_ref, atol=1e-5, rtol=1e-5))
    assert bool(jnp.allclose(context, context_ref, atol=1e-5, rtol=1e-5))
    print("KERNEL_OK")
</pallas_src>

<mosaic_0001>
module attributes {stable_mosaic.version = 11 : i64} {
  func.func @sdpa_kernel(%arg0: i32, %arg1: memref<2x8x64xf32, #tpu.memory_space<vmem>>, %arg2: memref<2x8x64xf32, #tpu.memory_space<vmem>>, %arg3: memref<2x8x32xf32, #tpu.memory_space<vmem>>, %arg4: memref<2x8x32xf32, #tpu.memory_space<vmem>>, %arg5: memref<2x8x8xf32, #tpu.memory_space<vmem>>) attributes {dimension_semantics = [#tpu.dimension_semantics<parallel>], iteration_bounds = array<i64: 2>, scalar_prefetch = 0 : i64, scratch_operands = 0 : i64, tpu.core_type = #tpu.core_type<tc>, window_params = [{transform_indices = @transform_0, window_bounds = array<i64: 2, 8, 64>}, {transform_indices = @transform_1, window_bounds = array<i64: 2, 8, 64>}, {transform_indices = @transform_2, window_bounds = array<i64: 2, 8, 32>}, {transform_indices = @transform_3, window_bounds = array<i64: 2, 8, 32>}, {transform_indices = @transform_4, window_bounds = array<i64: 2, 8, 8>}]} {
    %c0 = arith.constant 0 : index
    %c0_0 = arith.constant 0 : index
    %c0_1 = arith.constant 0 : index
    %0 = vector.load %arg1[%c0, %c0_0, %c0_1] : memref<2x8x64xf32, #tpu.memory_space<vmem>>, vector<2x8x64xf32>
    %c0_2 = arith.constant 0 : index
    %c0_3 = arith.constant 0 : index
    %c0_4 = arith.constant 0 : index
    %1 = vector.load %arg2[%c0_2, %c0_3, %c0_4] : memref<2x8x64xf32, #tpu.memory_space<vmem>>, vector<2x8x64xf32>
    %c0_5 = arith.constant 0 : index
    %c0_6 = arith.constant 0 : index
    %c0_7 = arith.constant 0 : index
    %2 = vector.load %arg3[%c0_5, %c0_6, %c0_7] : memref<2x8x32xf32, #tpu.memory_space<vmem>>, vector<2x8x32xf32>
    "tpu.trace_start"() <{level = 10 : i32, message = "bqd,bkd->bqk"}> : () -> ()
    %cst = arith.constant dense<0.000000e+00> : vector<2x8x8xf32>
    %3 = tpu.matmul %0, %1, %cst {dimension_numbers = #tpu.dot_dimension_numbers<[2], [2], [1], [1], [0, 0, 0, 1, 1, 1], [0], [0]>} : vector<2x8x64xf32>, vector<2x8x64xf32>, vector<2x8x8xf32> -> vector<2x8x8xf32>
    "tpu.trace_stop"() : () -> ()
    %cst_8 = arith.constant 1.250000e-01 : f32
    %4 = vector.broadcast %cst_8 : f32 to vector<2x8x8xf32>
    %5 = arith.mulf %3, %4 : vector<2x8x8xf32>
    %cst_9 = arith.constant dense<0xFF800000> : vector<2x8xf32>
    %6 = vector.multi_reduction <maximumf>, %5, %cst_9 [2] : vector<2x8x8xf32> to vector<2x8xf32>
    %7 = vector.shape_cast %6 : vector<2x8xf32> to vector<2x8x1xf32>
    %8 = vector.broadcast %7 : vector<2x8x1xf32> to vector<2x8x8xf32>
    %9 = arith.subf %5, %8 : vector<2x8x8xf32>
    %10 = math.exp %9 : vector<2x8x8xf32>
    %cst_10 = arith.constant dense<0.000000e+00> : vector<2x8xf32>
    %11 = vector.multi_reduction <add>, %10, %cst_10 [2] : vector<2x8x8xf32> to vector<2x8xf32>
    %12 = vector.shape_cast %11 : vector<2x8xf32> to vector<2x8x1xf32>
    %13 = tpu.reciprocal %12 : vector<2x8x1xf32> -> vector<2x8x1xf32>
    %14 = vector.broadcast %13 : vector<2x8x1xf32> to vector<2x8x8xf32>
    %15 = arith.mulf %10, %14 : vector<2x8x8xf32>
    "tpu.trace_start"() <{level = 10 : i32, message = "bqk,bkd->bqd"}> : () -> ()
    %cst_11 = arith.constant dense<0.000000e+00> : vector<2x8x32xf32>
    %16 = tpu.matmul %15, %2, %cst_11 {dimension_numbers = #tpu.dot_dimension_numbers<[2], [1], [1], [2], [0, 0, 0, 1, 1, 2], [0], [0]>} : vector<2x8x8xf32>, vector<2x8x32xf32>, vector<2x8x32xf32> -> vector<2x8x32xf32>
    "tpu.trace_stop"() : () -> ()
    %c0_12 = arith.constant 0 : index
    %c0_13 = arith.constant 0 : index
    %c0_14 = arith.constant 0 : index
    %17 = vector.load %arg5[%c0_12, %c0_13, %c0_14] : memref<2x8x8xf32, #tpu.memory_space<vmem>>, vector<2x8x8xf32>
    tpu.vector_store %arg5[%c0_12, %c0_13, %c0_14], %15 {strides = array<i32>} : memref<2x8x8xf32, #tpu.memory_space<vmem>>, vector<2x8x8xf32>,
    %c0_15 = arith.constant 0 : index
    %c0_16 = arith.constant 0 : index
    %c0_17 = arith.constant 0 : index
    %18 = vector.load %arg4[%c0_15, %c0_16, %c0_17] : memref<2x8x32xf32, #tpu.memory_space<vmem>>, vector<2x8x32xf32>
    tpu.vector_store %arg4[%c0_15, %c0_16, %c0_17], %16 {strides = array<i32>} : memref<2x8x32xf32, #tpu.memory_space<vmem>>, vector<2x8x32xf32>,
    return
  }
  func.func @transform_0(%arg0: i32) -> (i32, i32, i32) {
    %c0_i32 = arith.constant 0 : i32
    %c0_i32_0 = arith.constant 0 : i32
    %c0_i32_1 = arith.constant 0 : i32
    return %arg0, %c0_i32, %c0_i32_0 : i32, i32, i32
  }
  func.func @transform_1(%arg0: i32) -> (i32, i32, i32) {
    %c0_i32 = arith.constant 0 : i32
    %c0_i32_0 = arith.constant 0 : i32
    %c0_i32_1 = arith.constant 0 : i32
    return %arg0, %c0_i32, %c0_i32_0 : i32, i32, i32
  }
  func.func @transform_2(%arg0: i32) -> (i32, i32, i32) {
    %c0_i32 = arith.constant 0 : i32
    %c0_i32_0 = arith.constant 0 : i32
    %c0_i32_1 = arith.constant 0 : i32
    return %arg0, %c0_i32, %c0_i32_0 : i32, i32, i32
  }
  func.func @transform_3(%arg0: i32) -> (i32, i32, i32) {
    %c0_i32 = arith.constant 0 : i32
    %c0_i32_0 = arith.constant 0 : i32
    %c0_i32_1 = arith.constant 0 : i32
    return %arg0, %c0_i32, %c0_i32_0 : i32, i32, i32
  }
  func.func @transform_4(%arg0: i32) -> (i32, i32, i32) {
    %c0_i32 = arith.constant 0 : i32
    %c0_i32_0 = arith.constant 0 : i32
    %c0_i32_1 = arith.constant 0 : i32
    return %arg0, %c0_i32, %c0_i32_0 : i32, i32, i32
  }
}

</mosaic_0001>

<llo_original>
// kernel: tpu_custom_call.1
$region0: #{tpu_custom_call.1}
  #allocation0 [shape = 'u32[]', space=smem, size = 0x4, offset = 0x4, fixed_abs, tag = 'smem constant byte address 0x4 - core index']
  #allocation1 [shape = 'u32[72,128]{1,0:T(1,128)}', space=vmem, size = 0x9000, scoped, tag = 'internal scratch']
  %s0 = inlined_call_operand.hbm [shape: f32[4,8,64], index: 0, kind: input, shape index: {}]
  %s1 = inlined_call_operand.hbm [shape: f32[4,8,64], index: 1, kind: input, shape index: {}]
  %s2 = inlined_call_operand.hbm [shape: f32[4,8,32], index: 2, kind: input, shape index: {}]
  %s3 = inlined_call_operand.hbm [shape: f32[4,8,32], index: 3, kind: output, shape index: {0}]
  %s4 = inlined_call_operand.hbm [shape: f32[4,8,8], index: 4, kind: output, shape index: {1}]
  %5 = xla_tuple %s3, %s4
  %s6 = sld [smem:[#allocation0]]
  $region65: #{tpu_custom_call.1} parent=0
    _
  %s8 = ssub.s32 1, %s6
  %s9 = scalar_select 0, %s8, %s6
  $region1: #{tpu_custom_call.1} parent=0
    #allocation2 [shape = 'u8[16384]{0}', space=vmem, size = 0x4000, scoped, tag = 'input window, operand 0']
    #allocation3 [shape = 's32[2]{0}', space=sflag, size = 0x8, scoped, tag = 'scoped memory for tpu_custom_call.1']
    #allocation4 [shape = 's32[2]{0}', space=sflag, size = 0x8, scoped, tag = 'scoped memory for tpu_custom_call.1']
    #allocation5 [shape = 'u8[16384]{0}', space=vmem, size = 0x4000, scoped, tag = 'input window, operand 1']
    #allocation6 [shape = 's32[2]{0}', space=sflag, size = 0x8, scoped, tag = 'scoped memory for tpu_custom_call.1']
    #allocation7 [shape = 'u8[16384]{0}', space=vmem, size = 0x4000, scoped, tag = 'input window, operand 2']
    #allocation8 [shape = 'u8[16384]{0}', space=vmem, size = 0x4000, scoped, tag = 'output window, operand 0']
    #allocation9 [shape = 'u8[16384]{0}', space=vmem, size = 0x4000, scoped, tag = 'output window, operand 1']
    #allocation10 [shape = 's32[2]{0}', space=sflag, size = 0x8, scoped, tag = 'scoped memory for tpu_custom_call.1']
    %10 = vsyncpa [#allocation3], 0
    %s11 = scalar_lea.sflag [#allocation3], 1
    %12 = vsyncpa %s11, 0
    %13 = vsyncpa [#allocation6], 0
    %s14 = scalar_lea.sflag [#allocation6], 1
    %15 = vsyncpa %s14, 0
    %16 = vsyncpa [#allocation4], 0
    %s17 = scalar_lea.sflag [#allocation4], 1
    %18 = vsyncpa %s17, 0
    %19 = vsyncpa [#allocation10], 0
    %s20 = scalar_lea.sflag [#allocation10], 1
    %21 = vsyncpa %s20, 0
    loop: start=0, step=1, limit=4
    $region2: #{tpu_custom_call.1} parent=1 // loop_pre_header
      _
    $region3: #{tpu_custom_call.1} parent=1 // loop_header
      %s23 = sphi 0, %s27
      %p24 = scmp.ge.s32.totalorder %s23, 4
      %s33 = sphi 0, %s35
      %s36 = sphi 0, %s33
      %s37 = sphi 0, %s36
      %s53 = sphi 0, %s37
      %s59 = sphi 0, %s61
      %s62 = sphi 0, %s59
      %s63 = sphi 0, %s62
      %s79 = sphi 0, %s63
      %s85 = sphi 0, %s87
      %s88 = sphi 0, %s85
      %s89 = sphi 0, %s88
      %s105 = sphi 0, %s89
      %s111 = sphi 0, %s113
      %s114 = sphi 0, %s111
      %s115 = sphi 0, %s114
      %s131 = sphi 0, %s115
      %s137 = sphi 0, %s139
      %s140 = sphi 0, %s137
      %s141 = sphi 0, %s140
      %s157 = sphi 0, %s141
    $region4: #{tpu_custom_call.1} parent=1 // loop_header_branch
      %26 = sbr.rel (%p24) target = $region8
    $region5: #{tpu_custom_call.1} parent=1 // loop_body
      %s28 = ssub.s32 %s23, 1
      %s29 = ssub.s32 %s23, 2
      %s30 = sadd.s32 %s23, 1
      %s31 = ssub.s32 %s23, %s30
      %p32 = scmp.eq.s32.totalorder %s31, 0
      %s34 = sadd.s32 %s33, 1
      %s35 = scalar_select %p32, %s33, %s34
      %p38 = pneg %p32
      %p39 = scmp.eq.s32.totalorder %s23, 1
      %p40 = por %p38, %p39
      %p41 = scmp.ne.s32.totalorder %s33, %s36
      %p42 = scmp.eq.s32.totalorder %s23, 0
      %p43 = por %p41, %p42
      %p44 = scmp.ne.s32.totalorder %s33, %s36
      %p45 = scmp.eq.s32.totalorder %s28, 1
      %p46 = por %p44, %p45
      %p47 = scmp.ne.s32.totalorder %s36, %s37
      %p48 = scmp.eq.s32.totalorder %s28, 0
      %p49 = por %p47, %p48
      %p50 = scmp.ne.s32.totalorder %s36, %s37
      %p51 = scmp.eq.s32.totalorder %s29, 1
      %p52 = por %p50, %p51
      %p54 = scmp.ne.s32.totalorder %s37, %s53
      %p55 = scmp.eq.s32.totalorder %s29, 0
      %p56 = por %p54, %p55
      %s57 = ssub.s32 %s23, %s30
      %p58 = scmp.eq.s32.totalorder %s57, 0
      %s60 = sadd.s32 %s59, 1
      %s61 = scalar_select %p58, %s59, %s60
      %p64 = pneg %p58
      %p65 = scmp.eq.s32.totalorder %s23, 1
      %p66 = por %p64, %p65
      %p67 = scmp.ne.s32.totalorder %s59, %s62
      %p68 = scmp.eq.s32.totalorder %s23, 0
      %p69 = por %p67, %p68
      %p70 = scmp.ne.s32.totalorder %s59, %s62
      %p71 = scmp.eq.s32.totalorder %s28, 1
      %p72 = por %p70, %p71
      %p73 = scmp.ne.s32.totalorder %s62, %s63
      %p74 = scmp.eq.s32.totalorder %s28, 0
      %p75 = por %p73, %p74
      %p76 = scmp.ne.s32.totalorder %s62, %s63
      %p77 = scmp.eq.s32.totalorder %s29, 1
      %p78 = por %p76, %p77
      %p80 = scmp.ne.s32.totalorder %s63, %s79
      %p81 = scmp.eq.s32.totalorder %s29, 0
      %p82 = por %p80, %p81
      %s83 = ssub.s32 %s23, %s30
      %p84 = scmp.eq.s32.totalorder %s83, 0
      %s86 = sadd.s32 %s85, 1
      %s87 = scalar_select %p84, %s85, %s86
      %p90 = pneg %p84
      %p91 = scmp.eq.s32.totalorder %s23, 1
      %p92 = por %p90, %p91
      %p93 = scmp.ne.s32.totalorder %s85, %s88
      %p94 = scmp.eq.s32.totalorder %s23, 0
      %p95 = por %p93, %p94
      %p96 = scmp.ne.s32.totalorder %s85, %s88
      %p97 = scmp.eq.s32.totalorder %s28, 1
      %p98 = por %p96, %p97
      %p99 = scmp.ne.s32.totalorder %s88, %s89
      %p100 = scmp.eq.s32.totalorder %s28, 0
      %p101 = por %p99, %p100
      %p102 = scmp.ne.s32.totalorder %s88, %s89
      %p103 = scmp.eq.s32.totalorder %s29, 1
      %p104 = por %p102, %p103
      %p106 = scmp.ne.s32.totalorder %s89, %s105
      %p107 = scmp.eq.s32.totalorder %s29, 0
      %p108 = por %p106, %p107
      %s109 = ssub.s32 %s23, %s30
      %p110 = scmp.eq.s32.totalorder %s109, 0
      %s112 = sadd.s32 %s111, 1
      %s113 = scalar_select %p110, %s111, %s112
      %p116 = pneg %p110
      %p117 = scmp.eq.s32.totalorder %s23, 1
      %p118 = por %p116, %p117
      %p119 = scmp.ne.s32.totalorder %s111, %s114
      %p120 = scmp.eq.s32.totalorder %s23, 0
      %p121 = por %p119, %p120
      %p122 = scmp.ne.s32.totalorder %s111, %s114
      %p123 = scmp.eq.s32.totalorder %s28, 1
      %p124 = por %p122, %p123
      %p125 = scmp.ne.s32.totalorder %s114, %s115
      %p126 = scmp.eq.s32.totalorder %s28, 0
      %p127 = por %p125, %p126
      %p128 = scmp.ne.s32.totalorder %s114, %s115
      %p129 = scmp.eq.s32.totalorder %s29, 1
      %p130 = por %p128, %p129
      %p132 = scmp.ne.s32.totalorder %s115, %s131
      %p133 = scmp.eq.s32.totalorder %s29, 0
      %p134 = por %p132, %p133
      %s135 = ssub.s32 %s23, %s30
      %p136 = scmp.eq.s32.totalorder %s135, 0
      %s138 = sadd.s32 %s137, 1
      %s139 = scalar_select %p136, %s137, %s138
      %p142 = pneg %p136
      %p143 = scmp.eq.s32.totalorder %s23, 1
      %p144 = por %p142, %p143
      %p145 = scmp.ne.s32.totalorder %s137, %s140
      %p146 = scmp.eq.s32.totalorder %s23, 0
      %p147 = por %p145, %p146
      %p148 = scmp.ne.s32.totalorder %s137, %s140
      %p149 = scmp.eq.s32.totalorder %s28, 1
      %p150 = por %p148, %p149
      %p151 = scmp.ne.s32.totalorder %s140, %s141
      %p152 = scmp.eq.s32.totalorder %s28, 0
      %p153 = por %p151, %p152
      %p154 = scmp.ne.s32.totalorder %s140, %s141
      %p155 = scmp.eq.s32.totalorder %s29, 1
      %p156 = por %p154, %p155
      %p158 = scmp.ne.s32.totalorder %s141, %s157
      %p159 = scmp.eq.s32.totalorder %s29, 0
      %p160 = por %p158, %p159
      %p161 = scmp.le.s32.totalorder 1, %s23
      %p162 = scmp.lt.s32.totalorder %s23, 3
      %p163 = pnand %p161, %p162
      %p164 = pneg %p163
      // Predicated region
      $region9: #{tpu_custom_call.1} parent=5 // pred_check
        _
      $region10: #{tpu_custom_call.1} parent=5 // pred_check_branch
        %166 = sbr.rel (%p163) target = $region12
      $region11: #{tpu_custom_call.1} parent=5 // pred_region
        %s167 = ssub.s32 %s23, 1
      $region12: #{tpu_custom_call.1} parent=5 // pred_fallthru
        _
      %p168 = scmp.lt.s32.totalorder %s23, 2
      // Predicated region
      $region13: #{tpu_custom_call.1} parent=5 // pred_check
        %p169 = pneg %p168
      $region14: #{tpu_custom_call.1} parent=5 // pred_check_branch
        %171 = sbr.rel (%p169) target = $region16
      $region15: #{tpu_custom_call.1} parent=5 // pred_region
        // Predicated region
        $region17: #{tpu_custom_call.1} parent=15 // pred_check
          %p172 = pneg %p43
        $region18: #{tpu_custom_call.1} parent=15 // pred_check_branch
          %174 = sbr.rel (%p172) target = $region20
        $region19: #{tpu_custom_call.1} parent=15 // pred_region
          %s175 = sand.u32 %s33, 1
          %s176 = scalar_lea.sflag [#allocation3], %s175
          %s177 = sand.u32 %s33, 1
          %s178 = smul.addr %s177, 16
          %s179 = scalar_lea.vmem [#allocation2], %s178
          %s180 = smul.u32 2, %s23
          %182 = vsyncadd %s176, 0
          %s183 = smul.addr %s180, 8
          %s184 = scalar_lea.hbm %s0, %s183
          %s185 = sshll.u32 %s184, 4
          %s186 = int_to_ptr.hbm [resolvable:$true] %s185
          %s187 = sshll.u32 %s179, 4
          %s188 = int_to_ptr.vmem [resolvable:$true] %s187
          %193 = dma.hbm_to_vmem [thread:$0]  %s186, 256, %s188, %s176, 128, 128, 8
        $region20: #{tpu_custom_call.1} parent=15 // pred_fallthru
          _
        // Predicated region
        $region21: #{tpu_custom_call.1} parent=15 // pred_check
          %p194 = pneg %p69
        $region22: #{tpu_custom_call.1} parent=15 // pred_check_branch
          %196 = sbr.rel (%p194) target = $region24
        $region23: #{tpu_custom_call.1} parent=15 // pred_region
          %s197 = sand.u32 %s23, 1
          %s198 = scalar_lea.sflag [#allocation6], %s197
          %s199 = sand.u32 %s59, 1
          %s200 = smul.addr %s199, 16
          %s201 = scalar_lea.vmem [#allocation5], %s200
          %s202 = smul.u32 2, %s23
          %204 = vsyncadd %s198, 0
          %s205 = smul.addr %s202, 8
          %s206 = scalar_lea.hbm %s1, %s205
          %s207 = sshll.u32 %s206, 4
          %s208 = int_to_ptr.hbm [resolvable:$true] %s207
          %s209 = sshll.u32 %s201, 4
          %s210 = int_to_ptr.vmem [resolvable:$true] %s209
          %215 = dma.hbm_to_vmem [thread:$0]  %s208, 256, %s210, %s198, 128, 128, 8
        $region24: #{tpu_custom_call.1} parent=15 // pred_fallthru
          _
        // Predicated region
        $region25: #{tpu_custom_call.1} parent=15 // pred_check
          %p216 = pneg %p95
        $region26: #{tpu_custom_call.1} parent=15 // pred_check_branch
          %218 = sbr.rel (%p216) target = $region28
        $region27: #{tpu_custom_call.1} parent=15 // pred_region
          %s219 = sand.u32 %s23, 1
          %s220 = scalar_lea.sflag [#allocation6], %s219
          %s221 = sand.u32 %s85, 1
          %s222 = smul.addr %s221, 16
          %s223 = scalar_lea.vmem [#allocation7], %s222
          %s224 = smul.u32 2, %s23
          %226 = vsyncadd %s220, 0
          %s227 = smul.addr %s224, 8
          %s228 = scalar_lea.hbm %s2, %s227
          %s229 = sshll.u32 %s228, 4
          %s230 = int_to_ptr.hbm [resolvable:$true] %s229
          %s231 = sshll.u32 %s223, 4
          %s232 = int_to_ptr.vmem [resolvable:$true] %s231
          %237 = dma.hbm_to_vmem [thread:$0]  %s230, 256, %s232, %s220, 128, 128, 8
        $region28: #{tpu_custom_call.1} parent=15 // pred_fallthru
          _
      $region16: #{tpu_custom_call.1} parent=5 // pred_fallthru
        _
      %p238 = scmp.le.s32.totalorder 1, %s23
      %p239 = scmp.lt.s32.totalorder %s23, 3
      %p240 = pnand %p238, %p239
      %p241 = pneg %p240
      // Predicated region
      $region29: #{tpu_custom_call.1} parent=5 // pred_check
        _
      $region30: #{tpu_custom_call.1} parent=5 // pred_check_branch
        %243 = sbr.rel (%p240) target = $region32
      $region31: #{tpu_custom_call.1} parent=5 // pred_region
        %s244 = ssub.s32 %s23, 1
        %s245 = sand.u32 %s36, 1
        %s246 = scalar_lea.sflag [#allocation3], %s245
        %s247 = sand.u32 %s36, 1
        %s248 = smul.addr %s247, 16
        %s249 = scalar_lea.vmem [#allocation2], %s248
        // Predicated region
        $region33: #{tpu_custom_call.1} parent=31 // pred_check
          %p250 = pneg %p49
        $region34: #{tpu_custom_call.1} parent=31 // pred_check_branch
          %252 = sbr.rel (%p250) target = $region36
        $region35: #{tpu_custom_call.1} parent=31 // pred_region
          %254 = dma.done %s246, 256
        $region36: #{tpu_custom_call.1} parent=31 // pred_fallthru
          _
        %s255 = sand.u32 %s28, 1
        %s256 = scalar_lea.sflag [#allocation6], %s255
        %s257 = sand.u32 %s62, 1
        %s258 = smul.addr %s257, 16
        %s259 = scalar_lea.vmem [#allocation5], %s258
        // Predicated region
        $region37: #{tpu_custom_call.1} parent=31 // pred_check
          %p260 = pneg %p75
        $region38: #{tpu_custom_call.1} parent=31 // pred_check_branch
          %262 = sbr.rel (%p260) target = $region40
        $region39: #{tpu_custom_call.1} parent=31 // pred_region
          %264 = dma.done %s256, 256
        $region40: #{tpu_custom_call.1} parent=31 // pred_fallthru
          _
        %s265 = sand.u32 %s28, 1
        %s266 = scalar_lea.sflag [#allocation6], %s265
        %s267 = sand.u32 %s88, 1
        %s268 = smul.addr %s267, 16
        %s269 = scalar_lea.vmem [#allocation7], %s268
        // Predicated region
        $region41: #{tpu_custom_call.1} parent=31 // pred_check
          %p270 = pneg %p101
        $region42: #{tpu_custom_call.1} parent=31 // pred_check_branch
          %272 = sbr.rel (%p270) target = $region44
        $region43: #{tpu_custom_call.1} parent=31 // pred_region
          %274 = dma.done %s266, 256
        $region44: #{tpu_custom_call.1} parent=31 // pred_fallthru
          _
        %s275 = sand.u32 %s36, 1
        %s276 = scalar_lea.sflag [#allocation3], %s275
        %s277 = sand.u32 %s36, 1
        %s278 = smul.addr %s277, 16
        %s279 = scalar_lea.vmem [#allocation2], %s278
        %p280 = pneg %p49
        %p281 = pneg %p46
        %s282 = sand.u32 %s28, 1
        %s283 = scalar_lea.sflag [#allocation6], %s282
        %s284 = sand.u32 %s62, 1
        %s285 = smul.addr %s284, 16
        %s286 = scalar_lea.vmem [#allocation5], %s285
        %p287 = pneg %p75
        %p288 = pneg %p72
        %s289 = sand.u32 %s28, 1
        %s290 = scalar_lea.sflag [#allocation6], %s289
        %s291 = sand.u32 %s88, 1
        %s292 = smul.addr %s291, 16
        %s293 = scalar_lea.vmem [#allocation7], %s292
        %p294 = pneg %p101
        %p295 = pneg %p98
        %p296 = pneg %p127
        %p297 = pneg %p124
        %s298 = sand.u32 %s114, 1
        %s299 = scalar_lea.sflag [#allocation4], %s298
        %s300 = sand.u32 %s114, 1
        %s301 = smul.addr %s300, 16
        %s302 = scalar_lea.vmem [#allocation8], %s301
        %p303 = pneg %p153
        %p304 = pneg %p150
        %s305 = sand.u32 %s140, 1
        %s306 = scalar_lea.sflag [#allocation10], %s305
        %s307 = sand.u32 %s140, 1
        %s308 = smul.addr %s307, 16
        %s309 = scalar_lea.vmem [#allocation9], %s308
        %s310 = smul.u32 2, %s28
        %s311 = smul.u32 2, %s28
        %s312 = smul.u32 2, %s28
        %s313 = smul.u32 2, %s28
        %s314 = smul.u32 2, %s28
        %v315 = vld [vmem:[%s249] sm:$0xff]
        %v316 = vld [vmem:[%s249 + $0x8] sm:$0xff]
        %v317 = vld [vmem:[%s259] sm:$0xff]
        %v318 = vld [vmem:[%s259 + $0x8] sm:$0xff]
        %v319 = vld [vmem:[%s269] sm:$0xff]
        %v320 = vld [vmem:[%s269 + $0x8] sm:$0xff]
        %vm321 = vcmask 523264
        %v323 = vsel %vm321, %v315, 0
        %v326 = vsel %vm321, %v317, 0
        %328 = vmatpush.xpose.msra.mxu0 0.0
        %329 = vmatpush.xpose.msra.mxu0 0.0
        %330 = vmatpush.xpose.msra.mxu0 0.0
        %331 = vmatpush.xpose.msra.mxu0 0.0
        %332 = vmatpush.xpose.msra.mxu0 0.0
        %333 = vmatpush.xpose.msra.mxu0 0.0
        %334 = vmatpush.xpose.msra.mxu0 0.0
        %335 = vmatpush.xpose.msra.mxu0 0.0
        %336 = vmatpush.xpose.msra.mxu0 0.0
        %337 = vmatpush.xpose.msra.mxu0 0.0
        %338 = vmatpush.xpose.msra.mxu0 0.0
        %339 = vmatpush.xpose.msra.mxu0 0.0
        %340 = vmatpush.xpose.msra.mxu0 0.0
        %341 = vmatpush.xpose.msra.mxu0 0.0
        %342 = vmatpush.xpose.msra.mxu0 0.0
        %343 = vmatpush.xpose.msra.mxu0 %v326
        %344 = vmatmul.f32.gmra.mxu0 %v323
        %v345 = vpop.f32.mrf.mxu0
        %v346 = vadd.f32 0.0, %v345
        %347 = vdwg.mxu0
        %v349 = vsel %vm321, %v316, 0
        %v352 = vsel %vm321, %v318, 0
        %354 = vmatpush.xpose.msra.mxu0 0.0
        %355 = vmatpush.xpose.msra.mxu0 0.0
        %356 = vmatpush.xpose.msra.mxu0 0.0
        %357 = vmatpush.xpose.msra.mxu0 0.0
        %358 = vmatpush.xpose.msra.mxu0 0.0
        %359 = vmatpush.xpose.msra.mxu0 0.0
        %360 = vmatpush.xpose.msra.mxu0 0.0
        %361 = vmatpush.xpose.msra.mxu0 0.0
        %362 = vmatpush.xpose.msra.mxu0 0.0
        %363 = vmatpush.xpose.msra.mxu0 0.0
        %364 = vmatpush.xpose.msra.mxu0 0.0
        %365 = vmatpush.xpose.msra.mxu0 0.0
        %366 = vmatpush.xpose.msra.mxu0 0.0
        %367 = vmatpush.xpose.msra.mxu0 0.0
        %368 = vmatpush.xpose.msra.mxu0 0.0
        %369 = vmatpush.xpose.msra.mxu0 %v352
        %370 = vmatmul.f32.gmra.mxu0 %v349
        %v371 = vpop.f32.mrf.mxu0
        %v372 = vadd.f32 0.0, %v371
        %373 = vdwg.mxu0
        %v374 = vmul.f32 %v346, 0.125
        %v375 = vmul.f32 %v372, 0.125
        %vm376 = vcmask 64512
        %v377 = vsel %vm376, %v374, -inf
        %378 = vmax.xlane.f32.xlu0 %v377
        %v379 = vpop.xlane.xlu0 %378
        %v380 = vsel %vm376, %v375, -inf
        %381 = vmax.xlane.f32.xlu0 %v380
        %v382 = vpop.xlane.xlu0 %381
        %v383 = vsub.f32 %v374, %v379
        %v384 = vsub.f32 %v375, %v382
        %v385 = vmul.f32 %v383, 1.442695
        %v386 = vpow.pop %v385
        %v387 = vmul.f32 %v384, 1.442695
        %v388 = vpow.pop %v387
        %v389 = vsel %vm376, %v386, 0.0
        %390 = vadd.xlane.f32.xlu0 %v389
        %v391 = vpop.xlane.xlu0 %390
        %v392 = vsel %vm376, %v388, 0.0
        %393 = vadd.xlane.f32.xlu0 %v392
        %v394 = vpop.xlane.xlu0 %393
        %v395 = vrcp.pop %v391
        %v396 = vmul.f32 %v391, %v395
        %v397 = vsub.f32 1.0, %v396
        %v398 = vmul.f32 %v395, %v397
        %v399 = vadd.f32 %v395, %v398
        %vm400 = vweird.f32 %v391
        %vm401 = vweird.f32 %v395
        %vm402 = vmor %vm400, %vm401
        %v403 = vsel %vm402, %v395, %v399
        %v404 = vand.u32 2147483647, %v391
        %vm405 = vcmp.eq.f32.partialorder %v404, 8.507059e+37
        %v406 = vand.u32 %v391, 2147483648
        %v407 = vor.u32 1.1754944e-38, %v406
        %v408 = vsel %vm405, %v407, %v403
        %v409 = vrcp.pop %v394
        %v410 = vmul.f32 %v394, %v409
        %v411 = vsub.f32 1.0, %v410
        %v412 = vmul.f32 %v409, %v411
        %v413 = vadd.f32 %v409, %v412
        %vm414 = vweird.f32 %v394
        %vm415 = vweird.f32 %v409
        %vm416 = vmor %vm414, %vm415
        %v417 = vsel %vm416, %v409, %v413
        %v418 = vand.u32 2147483647, %v394
        %vm419 = vcmp.eq.f32.partialorder %v418, 8.507059e+37
        %v420 = vand.u32 %v394, 2147483648
        %v421 = vor.u32 1.1754944e-38, %v420
        %v422 = vsel %vm419, %v421, %v417
        %v423 = vmul.f32 %v386, %v408
        %v424 = vmul.f32 %v388, %v422
        %v426 = vsel %vm376, %v423, 0
        %428 = vmatpush.msra.mxu0 0.0
        %429 = vmatpush.msra.mxu0 0.0
        %430 = vmatpush.msra.mxu0 0.0
        %431 = vmatpush.msra.mxu0 0.0
        %432 = vmatpush.msra.mxu0 0.0
        %433 = vmatpush.msra.mxu0 0.0
        %434 = vmatpush.msra.mxu0 0.0
        %435 = vmatpush.msra.mxu0 0.0
        %436 = vmatpush.msra.mxu0 0.0
        %437 = vmatpush.msra.mxu0 0.0
        %438 = vmatpush.msra.mxu0 0.0
        %439 = vmatpush.msra.mxu0 0.0
        %440 = vmatpush.msra.mxu0 0.0
        %441 = vmatpush.msra.mxu0 0.0
        %442 = vmatpush.msra.mxu0 0.0
        %443 = vmatpush.msra.mxu0 %v319
        %444 = vmatmul.f32.gmra.mxu0 %v426
        %v445 = vpop.f32.mrf.mxu0
        %v446 = vadd.f32 0.0, %v445
        %447 = vdwg.mxu0
        %v449 = vsel %vm376, %v424, 0
        %451 = vmatpush.msra.mxu0 0.0
        %452 = vmatpush.msra.mxu0 0.0
        %453 = vmatpush.msra.mxu0 0.0
        %454 = vmatpush.msra.mxu0 0.0
        %455 = vmatpush.msra.mxu0 0.0
        %456 = vmatpush.msra.mxu0 0.0
        %457 = vmatpush.msra.mxu0 0.0
        %458 = vmatpush.msra.mxu0 0.0
        %459 = vmatpush.msra.mxu0 0.0
        %460 = vmatpush.msra.mxu0 0.0
        %461 = vmatpush.msra.mxu0 0.0
        %462 = vmatpush.msra.mxu0 0.0
        %463 = vmatpush.msra.mxu0 0.0
        %464 = vmatpush.msra.mxu0 0.0
        %465 = vmatpush.msra.mxu0 0.0
        %466 = vmatpush.msra.mxu0 %v320
        %467 = vmatmul.f32.gmra.mxu0 %v449
        %v468 = vpop.f32.mrf.mxu0
        %v469 = vadd.f32 0.0, %v468
        %470 = vdwg.mxu0
        %471 = vst.msk [vmem:[%s309] sm:$0xff] %vm376, %v423
        %472 = vst.msk [vmem:[%s309 + $0x8] sm:$0xff] %vm376, %v424
        %vm473 = vcmask 261120
        %474 = vst.msk [vmem:[%s302] sm:$0xff] %vm473, %v446
        %475 = vst.msk [vmem:[%s302 + $0x8] sm:$0xff] %vm473, %v469
        %s476 = sand.u32 %s114, 1
        %s477 = scalar_lea.sflag [#allocation4], %s476
        %s478 = sand.u32 %s114, 1
        %s479 = smul.addr %s478, 16
        %s480 = scalar_lea.vmem [#allocation8], %s479
        %s481 = sand.u32 %s140, 1
        %s482 = scalar_lea.sflag [#allocation10], %s481
        %s483 = sand.u32 %s140, 1
        %s484 = smul.addr %s483, 16
        %s485 = scalar_lea.vmem [#allocation9], %s484
        // Predicated region
        $region45: #{tpu_custom_call.1} parent=31 // pred_check
          %p486 = pneg %p124
        $region46: #{tpu_custom_call.1} parent=31 // pred_check_branch
          %488 = sbr.rel (%p486) target = $region48
        $region47: #{tpu_custom_call.1} parent=31 // pred_region
          %s489 = smul.u32 2, %s28
          %491 = vsyncadd %s477, 0
          %s492 = smul.addr %s489, 8
          %s493 = scalar_lea.hbm %s3, %s492
          %s494 = sshll.u32 %s480, 4
          %s495 = int_to_ptr.vmem [resolvable:$true] %s494
          %s496 = sshll.u32 %s493, 4
          %s497 = int_to_ptr.hbm [resolvable:$true] %s496
          %502 = dma.vmem_to_hbm [thread:$0]  %s495, 256, %s497, %s477, 128, 128, 8
        $region48: #{tpu_custom_call.1} parent=31 // pred_fallthru
          _
        // Predicated region
        $region49: #{tpu_custom_call.1} parent=31 // pred_check
          %p503 = pneg %p150
        $region50: #{tpu_custom_call.1} parent=31 // pred_check_branch
          %505 = sbr.rel (%p503) target = $region52
        $region51: #{tpu_custom_call.1} parent=31 // pred_region
          %s506 = smul.u32 2, %s28
          %508 = vsyncadd %s482, 0
          %s509 = smul.addr %s506, 8
          %s510 = scalar_lea.hbm %s4, %s509
          %s511 = sshll.u32 %s485, 4
          %s512 = int_to_ptr.vmem [resolvable:$true] %s511
          %s513 = sshll.u32 %s510, 4
          %s514 = int_to_ptr.hbm [resolvable:$true] %s513
          %519 = dma.vmem_to_hbm [thread:$0]  %s512, 256, %s514, %s482, 128, 128, 8
        $region52: #{tpu_custom_call.1} parent=31 // pred_fallthru
          _
      $region32: #{tpu_custom_call.1} parent=5 // pred_fallthru
        _
      %p520 = scmp.le.s32.totalorder 2, %s23
      // Predicated region
      $region53: #{tpu_custom_call.1} parent=5 // pred_check
        %p521 = pneg %p520
      $region54: #{tpu_custom_call.1} parent=5 // pred_check_branch
        %523 = sbr.rel (%p521) target = $region56
      $region55: #{tpu_custom_call.1} parent=5 // pred_region
        %s524 = ssub.s32 %s23, 2
        // Predicated region
        $region57: #{tpu_custom_call.1} parent=55 // pred_check
          %p525 = pneg %p130
        $region58: #{tpu_custom_call.1} parent=55 // pred_check_branch
          %527 = sbr.rel (%p525) target = $region60
        $region59: #{tpu_custom_call.1} parent=55 // pred_region
          %s528 = sand.u32 %s115, 1
          %s529 = scalar_lea.sflag [#allocation4], %s528
          %s530 = sand.u32 %s115, 1
          %s531 = smul.addr %s530, 16
          %s532 = scalar_lea.vmem [#allocation8], %s531
          %534 = dma.done %s529, 256
        $region60: #{tpu_custom_call.1} parent=55 // pred_fallthru
          _
        // Predicated region
        $region61: #{tpu_custom_call.1} parent=55 // pred_check
          %p535 = pneg %p156
        $region62: #{tpu_custom_call.1} parent=55 // pred_check_branch
          %537 = sbr.rel (%p535) target = $region64
        $region63: #{tpu_custom_call.1} parent=55 // pred_region
          %s538 = sand.u32 %s141, 1
          %s539 = scalar_lea.sflag [#allocation10], %s538
          %s540 = sand.u32 %s141, 1
          %s541 = smul.addr %s540, 16
          %s542 = scalar_lea.vmem [#allocation9], %s541
          %544 = dma.done %s539, 256
        $region64: #{tpu_custom_call.1} parent=55 // pred_fallthru
          _
      $region56: #{tpu_custom_call.1} parent=5 // pred_fallthru
        _
    $region6: #{tpu_custom_call.1} parent=1 // loop_footer
      %s27 = sadd.s32 1, %s23
    $region7: #{tpu_custom_call.1} parent=1 // loop_footer_branch
      %22 = sbr.rel target = $region3
    $region8: #{tpu_custom_call.1} parent=1 // loop_exit
      _
    %545 = vsyncpa [#allocation3], 1
    %s546 = scalar_lea.sflag [#allocation3], 1
    %547 = vsyncpa %s546, 1
    %548 = vsyncpa [#allocation6], 1
    %s549 = scalar_lea.sflag [#allocation6], 1
    %550 = vsyncpa %s549, 1
    %551 = vsyncpa [#allocation4], 1
    %s552 = scalar_lea.sflag [#allocation4], 1
    %553 = vsyncpa %s552, 1
    %554 = vsyncpa [#allocation10], 1
    %s555 = scalar_lea.sflag [#allocation10], 1
    %556 = vsyncpa %s555, 1

</llo_original>
